<compile_context>
chip_gen: v6e
topology: v6e:2x2x1
jax: 0.10.0
libtpu: 0.0.40
codegen_flags: <defaults>
</compile_context>

<pallas_src>
import math
import functools

import jax
import jax.numpy as jnp
from jax.experimental import pallas as pl
from jax.experimental.pallas import tpu as pltpu


def _gather_kernel(ids_ref, tab_hbm, out_ref, buf_ref, sem_ref, *, tm, vocab):
    """One grid step = one tile of `tm` tokens: DMA-gather their table rows.

    buf_ref : VMEM (2, tm, D) double-buffered staging tile
    sem_ref : DMA semaphores (2, tm), one per in-flight row copy
    """
    i = pl.program_id(0)
    nsteps = pl.num_programs(0)

    def issue(tile, slot):
        base = tile * tm
        for j in range(tm):
            row = ids_ref[base + j]
            # Clamp so bad ids cannot trigger an OOB HBM DMA.  (Padded slots
            # carry id 0 and are sliced off in the wrapper.)
            row = jnp.minimum(jnp.maximum(row, 0), vocab - 1)
            pltpu.make_async_copy(
                tab_hbm.at[pl.ds(row, 1), :],       # (1, D) row of the HBM table
                buf_ref.at[slot, pl.ds(j, 1), :],   # (1, D) slot of the staging tile
                sem_ref.at[slot, j],
            ).start()

    # Prime the pipeline: fetch tile 0 on the very first step.
    @pl.when(i == 0)
    def _():
        issue(0, 0)

    # Prefetch the next tile's rows into the other buffer slot; these DMAs
    # overlap with the wait + output store below (and with the pipeline's
    # output writeback of the previous tile).
    @pl.when(i + 1 < nsteps)
    def _():
        issue(i + 1, (i + 1) % 2)

    # Wait for the current tile's rows to land, then emit the (tm, D) block.
    slot = i % 2
    for j in range(tm):
        pltpu.make_async_copy(
            tab_hbm.at[pl.ds(0, 1), :],
            buf_ref.at[slot, pl.ds(j, 1), :],
            sem_ref.at[slot, j],
        ).wait()

    out_ref[...] = buf_ref[slot]


@functools.partial(jax.jit, static_argnames=("tm",))
def embedding_lookup(token_ids, table, *, tm=8):
    """Pallas embedding lookup.  token_ids: int array (...); table: (V, D)."""
    assert tm % 8 == 0, "tm must be a multiple of 8 for sublane-dense output tiles"
    orig_shape = token_ids.shape
    V, D = table.shape
    ids_flat = token_ids.reshape(-1).astype(jnp.int32)
    N = ids_flat.shape[0]

    # Pad token count to a multiple of tm (padded slots gather row 0, sliced off).
    n_pad = (-N) % tm
    if n_pad:
        ids_flat = jnp.pad(ids_flat, (0, n_pad))
    Np = ids_flat.shape[0]

    kernel = functools.partial(_gather_kernel, tm=tm, vocab=V)

    out = pl.pallas_call(
        kernel,
        out_shape=jax.ShapeDtypeStruct((Np, D), table.dtype),
        grid_spec=pltpu.PrefetchScalarGridSpec(
            num_scalar_prefetch=1,                          # ids -> SMEM
            grid=(Np // tm,),
            in_specs=[pl.BlockSpec(memory_space=pl.ANY)],   # table stays in HBM
            out_specs=pl.BlockSpec((tm, D), lambda i, ids: (i, 0)),
            scratch_shapes=[
                pltpu.VMEM((2, tm, D), table.dtype),        # double-buffered staging
                pltpu.SemaphoreType.DMA((2, tm)),           # one sem per in-flight row
            ],
        ),
        compiler_params=pltpu.CompilerParams(
            # Sequential grid: the cross-step DMA prefetch carries state
            # between iterations, so this axis must not be core-sharded.
            dimension_semantics=("arbitrary",),
        ),
    )(ids_flat, table)

    if n_pad:
        out = out[:N]
    return out.reshape(*orig_shape, D)


def init_embedding_table(key, num_embeddings, embedding_dim, dtype=jnp.float32):
    """Matches torch.nn.init.trunc_normal_(mean=0, std=1, a=-3, b=3)."""
    sigma = math.sqrt(1.0)
    w = jax.random.truncated_normal(
        key, lower=-3.0, upper=3.0,
        shape=(num_embeddings, embedding_dim), dtype=jnp.float32) * sigma
    return w.astype(dtype)


if __name__ == "__main__":
    key = jax.random.PRNGKey(0)
    k_tab, k_ids = jax.random.split(key)

    num_embeddings = 256   # vocabulary size V
    embedding_dim = 128    # d_model D
    B, S = 2, 8            # batch, sequence length

    table = init_embedding_table(k_tab, num_embeddings, embedding_dim)
    token_ids = jax.random.randint(k_ids, (B, S), 0, num_embeddings, dtype=jnp.int32)

    out = embedding_lookup(token_ids, table)
    out = jax.block_until_ready(out)

    # Sanity check against plain-JAX gather (the reference semantics).
    ref = table[token_ids]
    assert out.shape == (B, S, embedding_dim)
    assert out.dtype == table.dtype
    assert jnp.array_equal(out, ref), "mismatch vs reference gather"

    print("KERNEL_OK")
</pallas_src>

<mosaic_0001>
module attributes {stable_mosaic.version = 11 : i64} {
  func.func @_gather_kernel(%arg0: i32, %arg1: memref<16xi32, #tpu.memory_space<smem>>, %arg2: memref<256x128xf32, #tpu.memory_space<any>>, %arg3: memref<8x128xf32, #tpu.memory_space<vmem>>, %arg4: memref<2x8x128xf32, #tpu.memory_space<vmem>>, %arg5: memref<2x8x!tpu.dma_semaphore, #tpu.memory_space<semaphore_mem>>) attributes {dimension_semantics = [#tpu.dimension_semantics<arbitrary>], iteration_bounds = array<i64: 2>, scalar_prefetch = 1 : i64, scratch_operands = 2 : i64, tpu.core_type = #tpu.core_type<tc>, window_params = [{}, {transform_indices = @transform_1, window_bounds = array<i64: 8, 128>}]} {
    %c0_i32 = arith.constant 0 : i32
    %0 = arith.cmpi eq, %arg0, %c0_i32 : i32
    %1 = arith.extui %0 : i1 to i32
    %c0_i32_0 = arith.constant 0 : i32
    %2 = arith.cmpi ne, %1, %c0_i32_0 : i32
    scf.if %2 {
      %c0_46 = arith.constant 0 : index
      %61 = memref.load %arg1[%c0_46] : memref<16xi32, #tpu.memory_space<smem>>
      %c0_i32_47 = arith.constant 0 : i32
      %62 = arith.maxsi %61, %c0_i32_47 : i32
      %c255_i32 = arith.constant 255 : i32
      %63 = arith.minsi %62, %c255_i32 : i32
      %c0_i32_48 = arith.constant 0 : i32
      %c0_i32_49 = arith.constant 0 : i32
      %c0_i32_50 = arith.constant 0 : i32
      %c0_i32_51 = arith.constant 0 : i32
      %64 = tpu.memref_slice %arg2[%63, %c0_i32_51] : memref<256x128xf32, #tpu.memory_space<any>> -> memref<1x128xf32, #tpu.memory_space<any>>
      %c0_i32_52 = arith.constant 0 : i32
      %c0_i32_53 = arith.constant 0 : i32
      %65 = tpu.memref_slice %arg4[%c0_i32_48, %c0_i32_52, %c0_i32_53] : memref<2x8x128xf32, #tpu.memory_space<vmem>> -> memref<1x1x128xf32, #tpu.memory_space<vmem>>
      %66 = tpu.memref_squeeze %65 : memref<1x1x128xf32, #tpu.memory_space<vmem>> -> memref<1x128xf32, #tpu.memory_space<vmem>>
      %67 = tpu.memref_slice %arg5[%c0_i32_49, %c0_i32_50] : memref<2x8x!tpu.dma_semaphore, #tpu.memory_space<semaphore_mem>> -> memref<1x1x!tpu.dma_semaphore, #tpu.memory_space<semaphore_mem>>
      %68 = tpu.memref_squeeze %67 : memref<1x1x!tpu.dma_semaphore, #tpu.memory_space<semaphore_mem>> -> memref<!tpu.dma_semaphore, #tpu.memory_space<semaphore_mem>>
      tpu.enqueue_dma source(%64 : memref<1x128xf32, #tpu.memory_space<any>>) target(%66 : memref<1x128xf32, #tpu.memory_space<vmem>>) target_semaphore(%68 : memref<!tpu.dma_semaphore, #tpu.memory_space<semaphore_mem>>)
      %c1 = arith.constant 1 : index
      %69 = memref.load %arg1[%c1] : memref<16xi32, #tpu.memory_space<smem>>
      %c0_i32_54 = arith.constant 0 : i32
      %70 = arith.maxsi %69, %c0_i32_54 : i32
      %c255_i32_55 = arith.constant 255 : i32
      %71 = arith.minsi %70, %c255_i32_55 : i32
      %c0_i32_56 = arith.constant 0 : i32
      %c0_i32_57 = arith.constant 0 : i32
      %c1_i32_58 = arith.constant 1 : i32
      %c0_i32_59 = arith.constant 0 : i32
      %72 = tpu.memref_slice %arg2[%71, %c0_i32_59] : memref<256x128xf32, #tpu.memory_space<any>> -> memref<1x128xf32, #tpu.memory_space<any>>
      %c1_i32_60 = arith.constant 1 : i32
      %c0_i32_61 = arith.constant 0 : i32
      %73 = tpu.memref_slice %arg4[%c0_i32_56, %c1_i32_60, %c0_i32_61] : memref<2x8x128xf32, #tpu.memory_space<vmem>> -> memref<1x1x128xf32, #tpu.memory_space<vmem>>
      %74 = tpu.memref_squeeze %73 : memref<1x1x128xf32, #tpu.memory_space<vmem>> -> memref<1x128xf32, #tpu.memory_space<vmem>>
      %75 = tpu.memref_slice %arg5[%c0_i32_57, %c1_i32_58] : memref<2x8x!tpu.dma_semaphore, #tpu.memory_space<semaphore_mem>> -> memref<1x1x!tpu.dma_semaphore, #tpu.memory_space<semaphore_mem>>
      %76 = tpu.memref_squeeze %75 : memref<1x1x!tpu.dma_semaphore, #tpu.memory_space<semaphore_mem>> -> memref<!tpu.dma_semaphore, #tpu.memory_space<semaphore_mem>>
      tpu.enqueue_dma source(%72 : memref<1x128xf32, #tpu.memory_space<any>>) target(%74 : memref<1x128xf32, #tpu.memory_space<vmem>>) target_semaphore(%76 : memref<!tpu.dma_semaphore, #tpu.memory_space<semaphore_mem>>)
      %c2 = arith.constant 2 : index
      %77 = memref.load %arg1[%c2] : memref<16xi32, #tpu.memory_space<smem>>
      %c0_i32_62 = arith.constant 0 : i32
      %78 = arith.maxsi %77, %c0_i32_62 : i32
      %c255_i32_63 = arith.constant 255 : i32
      %79 = arith.minsi %78, %c255_i32_63 : i32
      %c0_i32_64 = arith.constant 0 : i32
      %c0_i32_65 = arith.constant 0 : i32
      %c2_i32_66 = arith.constant 2 : i32
      %c0_i32_67 = arith.constant 0 : i32
      %80 = tpu.memref_slice %arg2[%79, %c0_i32_67] : memref<256x128xf32, #tpu.memory_space<any>> -> memref<1x128xf32, #tpu.memory_space<any>>
      %c2_i32_68 = arith.constant 2 : i32
      %c0_i32_69 = arith.constant 0 : i32
      %81 = tpu.memref_slice %arg4[%c0_i32_64, %c2_i32_68, %c0_i32_69] : memref<2x8x128xf32, #tpu.memory_space<vmem>> -> memref<1x1x128xf32, #tpu.memory_space<vmem>>
      %82 = tpu.memref_squeeze %81 : memref<1x1x128xf32, #tpu.memory_space<vmem>> -> memref<1x128xf32, #tpu.memory_space<vmem>>
      %83 = tpu.memref_slice %arg5[%c0_i32_65, %c2_i32_66] : memref<2x8x!tpu.dma_semaphore, #tpu.memory_space<semaphore_mem>> -> memref<1x1x!tpu.dma_semaphore, #tpu.memory_space<semaphore_mem>>
      %84 = tpu.memref_squeeze %83 : memref<1x1x!tpu.dma_semaphore, #tpu.memory_space<semaphore_mem>> -> memref<!tpu.dma_semaphore, #tpu.memory_space<semaphore_mem>>
      tpu.enqueue_dma source(%80 : memref<1x128xf32, #tpu.memory_space<any>>) target(%82 : memref<1x128xf32, #tpu.memory_space<vmem>>) target_semaphore(%84 : memref<!tpu.dma_semaphore, #tpu.memory_space<semaphore_mem>>)
      %c3 = arith.constant 3 : index
      %85 = memref.load %arg1[%c3] : memref<16xi32, #tpu.memory_space<smem>>
      %c0_i32_70 = arith.constant 0 : i32
      %86 = arith.maxsi %85, %c0_i32_70 : i32
      %c255_i32_71 = arith.constant 255 : i32
      %87 = arith.minsi %86, %c255_i32_71 : i32
      %c0_i32_72 = arith.constant 0 : i32
      %c0_i32_73 = arith.constant 0 : i32
      %c3_i32_74 = arith.constant 3 : i32
      %c0_i32_75 = arith.constant 0 : i32
      %88 = tpu.memref_slice %arg2[%87, %c0_i32_75] : memref<256x128xf32, #tpu.memory_space<any>> -> memref<1x128xf32, #tpu.memory_space<any>>
      %c3_i32_76 = arith.constant 3 : i32
      %c0_i32_77 = arith.constant 0 : i32
      %89 = tpu.memref_slice %arg4[%c0_i32_72, %c3_i32_76, %c0_i32_77] : memref<2x8x128xf32, #tpu.memory_space<vmem>> -> memref<1x1x128xf32, #tpu.memory_space<vmem>>
      %90 = tpu.memref_squeeze %89 : memref<1x1x128xf32, #tpu.memory_space<vmem>> -> memref<1x128xf32, #tpu.memory_space<vmem>>
      %91 = tpu.memref_slice %arg5[%c0_i32_73, %c3_i32_74] : memref<2x8x!tpu.dma_semaphore, #tpu.memory_space<semaphore_mem>> -> memref<1x1x!tpu.dma_semaphore, #tpu.memory_space<semaphore_mem>>
      %92 = tpu.memref_squeeze %91 : memref<1x1x!tpu.dma_semaphore, #tpu.memory_space<semaphore_mem>> -> memref<!tpu.dma_semaphore, #tpu.memory_space<semaphore_mem>>
      tpu.enqueue_dma source(%88 : memref<1x128xf32, #tpu.memory_space<any>>) target(%90 : memref<1x128xf32, #tpu.memory_space<vmem>>) target_semaphore(%92 : memref<!tpu.dma_semaphore, #tpu.memory_space<semaphore_mem>>)
      %c4 = arith.constant 4 : index
      %93 = memref.load %arg1[%c4] : memref<16xi32, #tpu.memory_space<smem>>
      %c0_i32_78 = arith.constant 0 : i32
      %94 = arith.maxsi %93, %c0_i32_78 : i32
      %c255_i32_79 = arith.constant 255 : i32
      %95 = arith.minsi %94, %c255_i32_79 : i32
      %c0_i32_80 = arith.constant 0 : i32
      %c0_i32_81 = arith.constant 0 : i32
      %c4_i32_82 = arith.constant 4 : i32
      %c0_i32_83 = arith.constant 0 : i32
      %96 = tpu.memref_slice %arg2[%95, %c0_i32_83] : memref<256x128xf32, #tpu.memory_space<any>> -> memref<1x128xf32, #tpu.memory_space<any>>
      %c4_i32_84 = arith.constant 4 : i32
      %c0_i32_85 = arith.constant 0 : i32
      %97 = tpu.memref_slice %arg4[%c0_i32_80, %c4_i32_84, %c0_i32_85] : memref<2x8x128xf32, #tpu.memory_space<vmem>> -> memref<1x1x128xf32, #tpu.memory_space<vmem>>
      %98 = tpu.memref_squeeze %97 : memref<1x1x128xf32, #tpu.memory_space<vmem>> -> memref<1x128xf32, #tpu.memory_space<vmem>>
      %99 = tpu.memref_slice %arg5[%c0_i32_81, %c4_i32_82] : memref<2x8x!tpu.dma_semaphore, #tpu.memory_space<semaphore_mem>> -> memref<1x1x!tpu.dma_semaphore, #tpu.memory_space<semaphore_mem>>
      %100 = tpu.memref_squeeze %99 : memref<1x1x!tpu.dma_semaphore, #tpu.memory_space<semaphore_mem>> -> memref<!tpu.dma_semaphore, #tpu.memory_space<semaphore_mem>>
      tpu.enqueue_dma source(%96 : memref<1x128xf32, #tpu.memory_space<any>>) target(%98 : memref<1x128xf32, #tpu.memory_space<vmem>>) target_semaphore(%100 : memref<!tpu.dma_semaphore, #tpu.memory_space<semaphore_mem>>)
      %c5 = arith.constant 5 : index
      %101 = memref.load %arg1[%c5] : memref<16xi32, #tpu.memory_space<smem>>
      %c0_i32_86 = arith.constant 0 : i32
      %102 = arith.maxsi %101, %c0_i32_86 : i32
      %c255_i32_87 = arith.constant 255 : i32
      %103 = arith.minsi %102, %c255_i32_87 : i32
      %c0_i32_88 = arith.constant 0 : i32
      %c0_i32_89 = arith.constant 0 : i32
      %c5_i32_90 = arith.constant 5 : i32
      %c0_i32_91 = arith.constant 0 : i32
      %104 = tpu.memref_slice %arg2[%103, %c0_i32_91] : memref<256x128xf32, #tpu.memory_space<any>> -> memref<1x128xf32, #tpu.memory_space<any>>
      %c5_i32_92 = arith.constant 5 : i32
      %c0_i32_93 = arith.constant 0 : i32
      %105 = tpu.memref_slice %arg4[%c0_i32_88, %c5_i32_92, %c0_i32_93] : memref<2x8x128xf32, #tpu.memory_space<vmem>> -> memref<1x1x128xf32, #tpu.memory_space<vmem>>
      %106 = tpu.memref_squeeze %105 : memref<1x1x128xf32, #tpu.memory_space<vmem>> -> memref<1x128xf32, #tpu.memory_space<vmem>>
      %107 = tpu.memref_slice %arg5[%c0_i32_89, %c5_i32_90] : memref<2x8x!tpu.dma_semaphore, #tpu.memory_space<semaphore_mem>> -> memref<1x1x!tpu.dma_semaphore, #tpu.memory_space<semaphore_mem>>
      %108 = tpu.memref_squeeze %107 : memref<1x1x!tpu.dma_semaphore, #tpu.memory_space<semaphore_mem>> -> memref<!tpu.dma_semaphore, #tpu.memory_space<semaphore_mem>>
      tpu.enqueue_dma source(%104 : memref<1x128xf32, #tpu.memory_space<any>>) target(%106 : memref<1x128xf32, #tpu.memory_space<vmem>>) target_semaphore(%108 : memref<!tpu.dma_semaphore, #tpu.memory_space<semaphore_mem>>)
      %c6 = arith.constant 6 : index
      %109 = memref.load %arg1[%c6] : memref<16xi32, #tpu.memory_space<smem>>
      %c0_i32_94 = arith.constant 0 : i32
      %110 = arith.maxsi %109, %c0_i32_94 : i32
      %c255_i32_95 = arith.constant 255 : i32
      %111 = arith.minsi %110, %c255_i32_95 : i32
      %c0_i32_96 = arith.constant 0 : i32
      %c0_i32_97 = arith.constant 0 : i32
      %c6_i32_98 = arith.constant 6 : i32
      %c0_i32_99 = arith.constant 0 : i32
      %112 = tpu.memref_slice %arg2[%111, %c0_i32_99] : memref<256x128xf32, #tpu.memory_space<any>> -> memref<1x128xf32, #tpu.memory_space<any>>
      %c6_i32_100 = arith.constant 6 : i32
      %c0_i32_101 = arith.constant 0 : i32
      %113 = tpu.memref_slice %arg4[%c0_i32_96, %c6_i32_100, %c0_i32_101] : memref<2x8x128xf32, #tpu.memory_space<vmem>> -> memref<1x1x128xf32, #tpu.memory_space<vmem>>
      %114 = tpu.memref_squeeze %113 : memref<1x1x128xf32, #tpu.memory_space<vmem>> -> memref<1x128xf32, #tpu.memory_space<vmem>>
      %115 = tpu.memref_slice %arg5[%c0_i32_97, %c6_i32_98] : memref<2x8x!tpu.dma_semaphore, #tpu.memory_space<semaphore_mem>> -> memref<1x1x!tpu.dma_semaphore, #tpu.memory_space<semaphore_mem>>
      %116 = tpu.memref_squeeze %115 : memref<1x1x!tpu.dma_semaphore, #tpu.memory_space<semaphore_mem>> -> memref<!tpu.dma_semaphore, #tpu.memory_space<semaphore_mem>>
      tpu.enqueue_dma source(%112 : memref<1x128xf32, #tpu.memory_space<any>>) target(%114 : memref<1x128xf32, #tpu.memory_space<vmem>>) target_semaphore(%116 : memref<!tpu.dma_semaphore, #tpu.memory_space<semaphore_mem>>)
      %c7 = arith.constant 7 : index
      %117 = memref.load %arg1[%c7] : memref<16xi32, #tpu.memory_space<smem>>
      %c0_i32_102 = arith.constant 0 : i32
      %118 = arith.maxsi %117, %c0_i32_102 : i32
      %c255_i32_103 = arith.constant 255 : i32
      %119 = arith.minsi %118, %c255_i32_103 : i32
      %c0_i32_104 = arith.constant 0 : i32
      %c0_i32_105 = arith.constant 0 : i32
      %c7_i32_106 = arith.constant 7 : i32
      %c0_i32_107 = arith.constant 0 : i32
      %120 = tpu.memref_slice %arg2[%119, %c0_i32_107] : memref<256x128xf32, #tpu.memory_space<any>> -> memref<1x128xf32, #tpu.memory_space<any>>
      %c7_i32_108 = arith.constant 7 : i32
      %c0_i32_109 = arith.constant 0 : i32
      %121 = tpu.memref_slice %arg4[%c0_i32_104, %c7_i32_108, %c0_i32_109] : memref<2x8x128xf32, #tpu.memory_space<vmem>> -> memref<1x1x128xf32, #tpu.memory_space<vmem>>
      %122 = tpu.memref_squeeze %121 : memref<1x1x128xf32, #tpu.memory_space<vmem>> -> memref<1x128xf32, #tpu.memory_space<vmem>>
      %123 = tpu.memref_slice %arg5[%c0_i32_105, %c7_i32_106] : memref<2x8x!tpu.dma_semaphore, #tpu.memory_space<semaphore_mem>> -> memref<1x1x!tpu.dma_semaphore, #tpu.memory_space<semaphore_mem>>
      %124 = tpu.memref_squeeze %123 : memref<1x1x!tpu.dma_semaphore, #tpu.memory_space<semaphore_mem>> -> memref<!tpu.dma_semaphore, #tpu.memory_space<semaphore_mem>>
      tpu.enqueue_dma source(%120 : memref<1x128xf32, #tpu.memory_space<any>>) target(%122 : memref<1x128xf32, #tpu.memory_space<vmem>>) target_semaphore(%124 : memref<!tpu.dma_semaphore, #tpu.memory_space<semaphore_mem>>)
    } else {
    }
    %c1_i32 = arith.constant 1 : i32
    %3 = arith.addi %arg0, %c1_i32 : i32
    %c2_i32 = arith.constant 2 : i32
    %4 = arith.cmpi slt, %3, %c2_i32 : i32
    %5 = arith.extui %4 : i1 to i32
    %c0_i32_1 = arith.constant 0 : i32
    %6 = arith.cmpi ne, %5, %c0_i32_1 : i32
    scf.if %6 {
      %c1_i32_46 = arith.constant 1 : i32
      %61 = arith.addi %arg0, %c1_i32_46 : i32
      %c1_i32_47 = arith.constant 1 : i32
      %62 = arith.addi %arg0, %c1_i32_47 : i32
      %c2_i32_48 = arith.constant 2 : i32
      %c0_i32_49 = arith.constant 0 : i32
      %63 = arith.cmpi eq, %c2_i32_48, %c0_i32_49 : i32
      %c1_i32_50 = arith.constant 1 : i32
      %64 = arith.select %63, %c1_i32_50, %c2_i32_48 : i32
      %65 = arith.remsi %62, %64 : i32
      %c0_i32_51 = arith.constant 0 : i32
      %66 = arith.cmpi ne, %65, %c0_i32_51 : i32
      %c0_i32_52 = arith.constant 0 : i32
      %67 = arith.cmpi slt, %65, %c0_i32_52 : i32
      %c0_i32_53 = arith.constant 0 : i32
      %68 = arith.cmpi slt, %64, %c0_i32_53 : i32
      %69 = arith.xori %67, %68 : i1
      %70 = arith.andi %69, %66 : i1
      %71 = arith.addi %65, %64 : i32
      %72 = arith.select %70, %71, %65 : i32
      %c8_i32 = arith.constant 8 : i32
      %73 = arith.muli %61, %c8_i32 : i32
      %c0_i32_54 = arith.constant 0 : i32
      %74 = arith.addi %73, %c0_i32_54 : i32
      %75 = arith.index_cast %74 : i32 to index
      %76 = memref.load %arg1[%75] : memref<16xi32, #tpu.memory_space<smem>>
      %c0_i32_55 = arith.constant 0 : i32
      %77 = arith.maxsi %76, %c0_i32_55 : i32
      %c255_i32 = arith.constant 255 : i32
      %78 = arith.minsi %77, %c255_i32 : i32
      %c0_i32_56 = arith.constant 0 : i32
      %c0_i32_57 = arith.constant 0 : i32
      %79 = tpu.memref_slice %arg2[%78, %c0_i32_57] : memref<256x128xf32, #tpu.memory_space<any>> -> memref<1x128xf32, #tpu.memory_space<any>>
      %c0_i32_58 = arith.constant 0 : i32
      %c0_i32_59 = arith.constant 0 : i32
      %80 = tpu.memref_slice %arg4[%72, %c0_i32_58, %c0_i32_59] : memref<2x8x128xf32, #tpu.memory_space<vmem>> -> memref<1x1x128xf32, #tpu.memory_space<vmem>>
      %81 = tpu.memref_squeeze %80 : memref<1x1x128xf32, #tpu.memory_space<vmem>> -> memref<1x128xf32, #tpu.memory_space<vmem>>
      %82 = tpu.memref_slice %arg5[%72, %c0_i32_56] : memref<2x8x!tpu.dma_semaphore, #tpu.memory_space<semaphore_mem>> -> memref<1x1x!tpu.dma_semaphore, #tpu.memory_space<semaphore_mem>>
      %83 = tpu.memref_squeeze %82 : memref<1x1x!tpu.dma_semaphore, #tpu.memory_space<semaphore_mem>> -> memref<!tpu.dma_semaphore, #tpu.memory_space<semaphore_mem>>
      tpu.enqueue_dma source(%79 : memref<1x128xf32, #tpu.memory_space<any>>) target(%81 : memref<1x128xf32, #tpu.memory_space<vmem>>) target_semaphore(%83 : memref<!tpu.dma_semaphore, #tpu.memory_space<semaphore_mem>>)
      %c1_i32_60 = arith.constant 1 : i32
      %84 = arith.addi %73, %c1_i32_60 : i32
      %85 = arith.index_cast %84 : i32 to index
      %86 = memref.load %arg1[%85] : memref<16xi32, #tpu.memory_space<smem>>
      %c0_i32_61 = arith.constant 0 : i32
      %87 = arith.maxsi %86, %c0_i32_61 : i32
      %c255_i32_62 = arith.constant 255 : i32
      %88 = arith.minsi %87, %c255_i32_62 : i32
      %c1_i32_63 = arith.constant 1 : i32
      %c0_i32_64 = arith.constant 0 : i32
      %89 = tpu.memref_slice %arg2[%88, %c0_i32_64] : memref<256x128xf32, #tpu.memory_space<any>> -> memref<1x128xf32, #tpu.memory_space<any>>
      %c1_i32_65 = arith.constant 1 : i32
      %c0_i32_66 = arith.constant 0 : i32
      %90 = tpu.memref_slice %arg4[%72, %c1_i32_65, %c0_i32_66] : memref<2x8x128xf32, #tpu.memory_space<vmem>> -> memref<1x1x128xf32, #tpu.memory_space<vmem>>
      %91 = tpu.memref_squeeze %90 : memref<1x1x128xf32, #tpu.memory_space<vmem>> -> memref<1x128xf32, #tpu.memory_space<vmem>>
      %92 = tpu.memref_slice %arg5[%72, %c1_i32_63] : memref<2x8x!tpu.dma_semaphore, #tpu.memory_space<semaphore_mem>> -> memref<1x1x!tpu.dma_semaphore, #tpu.memory_space<semaphore_mem>>
      %93 = tpu.memref_squeeze %92 : memref<1x1x!tpu.dma_semaphore, #tpu.memory_space<semaphore_mem>> -> memref<!tpu.dma_semaphore, #tpu.memory_space<semaphore_mem>>
      tpu.enqueue_dma source(%89 : memref<1x128xf32, #tpu.memory_space<any>>) target(%91 : memref<1x128xf32, #tpu.memory_space<vmem>>) target_semaphore(%93 : memref<!tpu.dma_semaphore, #tpu.memory_space<semaphore_mem>>)
      %c2_i32_67 = arith.constant 2 : i32
      %94 = arith.addi %73, %c2_i32_67 : i32
      %95 = arith.index_cast %94 : i32 to index
      %96 = memref.load %arg1[%95] : memref<16xi32, #tpu.memory_space<smem>>
      %c0_i32_68 = arith.constant 0 : i32
      %97 = arith.maxsi %96, %c0_i32_68 : i32
      %c255_i32_69 = arith.constant 255 : i32
      %98 = arith.minsi %97, %c255_i32_69 : i32
      %c2_i32_70 = arith.constant 2 : i32
      %c0_i32_71 = arith.constant 0 : i32
      %99 = tpu.memref_slice %arg2[%98, %c0_i32_71] : memref<256x128xf32, #tpu.memory_space<any>> -> memref<1x128xf32, #tpu.memory_space<any>>
      %c2_i32_72 = arith.constant 2 : i32
      %c0_i32_73 = arith.constant 0 : i32
      %100 = tpu.memref_slice %arg4[%72, %c2_i32_72, %c0_i32_73] : memref<2x8x128xf32, #tpu.memory_space<vmem>> -> memref<1x1x128xf32, #tpu.memory_space<vmem>>
      %101 = tpu.memref_squeeze %100 : memref<1x1x128xf32, #tpu.memory_space<vmem>> -> memref<1x128xf32, #tpu.memory_space<vmem>>
      %102 = tpu.memref_slice %arg5[%72, %c2_i32_70] : memref<2x8x!tpu.dma_semaphore, #tpu.memory_space<semaphore_mem>> -> memref<1x1x!tpu.dma_semaphore, #tpu.memory_space<semaphore_mem>>
      %103 = tpu.memref_squeeze %102 : memref<1x1x!tpu.dma_semaphore, #tpu.memory_space<semaphore_mem>> -> memref<!tpu.dma_semaphore, #tpu.memory_space<semaphore_mem>>
      tpu.enqueue_dma source(%99 : memref<1x128xf32, #tpu.memory_space<any>>) target(%101 : memref<1x128xf32, #tpu.memory_space<vmem>>) target_semaphore(%103 : memref<!tpu.dma_semaphore, #tpu.memory_space<semaphore_mem>>)
      %c3_i32_74 = arith.constant 3 : i32
      %104 = arith.addi %73, %c3_i32_74 : i32
      %105 = arith.index_cast %104 : i32 to index
      %106 = memref.load %arg1[%105] : memref<16xi32, #tpu.memory_space<smem>>
      %c0_i32_75 = arith.constant 0 : i32
      %107 = arith.maxsi %106, %c0_i32_75 : i32
      %c255_i32_76 = arith.constant 255 : i32
      %108 = arith.minsi %107, %c255_i32_76 : i32
      %c3_i32_77 = arith.constant 3 : i32
      %c0_i32_78 = arith.constant 0 : i32
      %109 = tpu.memref_slice %arg2[%108, %c0_i32_78] : memref<256x128xf32, #tpu.memory_space<any>> -> memref<1x128xf32, #tpu.memory_space<any>>
      %c3_i32_79 = arith.constant 3 : i32
      %c0_i32_80 = arith.constant 0 : i32
      %110 = tpu.memref_slice %arg4[%72, %c3_i32_79, %c0_i32_80] : memref<2x8x128xf32, #tpu.memory_space<vmem>> -> memref<1x1x128xf32, #tpu.memory_space<vmem>>
      %111 = tpu.memref_squeeze %110 : memref<1x1x128xf32, #tpu.memory_space<vmem>> -> memref<1x128xf32, #tpu.memory_space<vmem>>
      %112 = tpu.memref_slice %arg5[%72, %c3_i32_77] : memref<2x8x!tpu.dma_semaphore, #tpu.memory_space<semaphore_mem>> -> memref<1x1x!tpu.dma_semaphore, #tpu.memory_space<semaphore_mem>>
      %113 = tpu.memref_squeeze %112 : memref<1x1x!tpu.dma_semaphore, #tpu.memory_space<semaphore_mem>> -> memref<!tpu.dma_semaphore, #tpu.memory_space<semaphore_mem>>
      tpu.enqueue_dma source(%109 : memref<1x128xf32, #tpu.memory_space<any>>) target(%111 : memref<1x128xf32, #tpu.memory_space<vmem>>) target_semaphore(%113 : memref<!tpu.dma_semaphore, #tpu.memory_space<semaphore_mem>>)
      %c4_i32_81 = arith.constant 4 : i32
      %114 = arith.addi %73, %c4_i32_81 : i32
      %115 = arith.index_cast %114 : i32 to index
      %116 = memref.load %arg1[%115] : memref<16xi32, #tpu.memory_space<smem>>
      %c0_i32_82 = arith.constant 0 : i32
      %117 = arith.maxsi %116, %c0_i32_82 : i32
      %c255_i32_83 = arith.constant 255 : i32
      %118 = arith.minsi %117, %c255_i32_83 : i32
      %c4_i32_84 = arith.constant 4 : i32
      %c0_i32_85 = arith.constant 0 : i32
      %119 = tpu.memref_slice %arg2[%118, %c0_i32_85] : memref<256x128xf32, #tpu.memory_space<any>> -> memref<1x128xf32, #tpu.memory_space<any>>
      %c4_i32_86 = arith.constant 4 : i32
      %c0_i32_87 = arith.constant 0 : i32
      %120 = tpu.memref_slice %arg4[%72, %c4_i32_86, %c0_i32_87] : memref<2x8x128xf32, #tpu.memory_space<vmem>> -> memref<1x1x128xf32, #tpu.memory_space<vmem>>
      %121 = tpu.memref_squeeze %120 : memref<1x1x128xf32, #tpu.memory_space<vmem>> -> memref<1x128xf32, #tpu.memory_space<vmem>>
      %122 = tpu.memref_slice %arg5[%72, %c4_i32_84] : memref<2x8x!tpu.dma_semaphore, #tpu.memory_space<semaphore_mem>> -> memref<1x1x!tpu.dma_semaphore, #tpu.memory_space<semaphore_mem>>
      %123 = tpu.memref_squeeze %122 : memref<1x1x!tpu.dma_semaphore, #tpu.memory_space<semaphore_mem>> -> memref<!tpu.dma_semaphore, #tpu.memory_space<semaphore_mem>>
      tpu.enqueue_dma source(%119 : memref<1x128xf32, #tpu.memory_space<any>>) target(%121 : memref<1x128xf32, #tpu.memory_space<vmem>>) target_semaphore(%123 : memref<!tpu.dma_semaphore, #tpu.memory_space<semaphore_mem>>)
      %c5_i32_88 = arith.constant 5 : i32
      %124 = arith.addi %73, %c5_i32_88 : i32
      %125 = arith.index_cast %124 : i32 to index
      %126 = memref.load %arg1[%125] : memref<16xi32, #tpu.memory_space<smem>>
      %c0_i32_89 = arith.constant 0 : i32
      %127 = arith.maxsi %126, %c0_i32_89 : i32
      %c255_i32_90 = arith.constant 255 : i32
      %128 = arith.minsi %127, %c255_i32_90 : i32
      %c5_i32_91 = arith.constant 5 : i32
      %c0_i32_92 = arith.constant 0 : i32
      %129 = tpu.memref_slice %arg2[%128, %c0_i32_92] : memref<256x128xf32, #tpu.memory_space<any>> -> memref<1x128xf32, #tpu.memory_space<any>>
      %c5_i32_93 = arith.constant 5 : i32
      %c0_i32_94 = arith.constant 0 : i32
      %130 = tpu.memref_slice %arg4[%72, %c5_i32_93, %c0_i32_94] : memref<2x8x128xf32, #tpu.memory_space<vmem>> -> memref<1x1x128xf32, #tpu.memory_space<vmem>>
      %131 = tpu.memref_squeeze %130 : memref<1x1x128xf32, #tpu.memory_space<vmem>> -> memref<1x128xf32, #tpu.memory_space<vmem>>
      %132 = tpu.memref_slice %arg5[%72, %c5_i32_91] : memref<2x8x!tpu.dma_semaphore, #tpu.memory_space<semaphore_mem>> -> memref<1x1x!tpu.dma_semaphore, #tpu.memory_space<semaphore_mem>>
      %133 = tpu.memref_squeeze %132 : memref<1x1x!tpu.dma_semaphore, #tpu.memory_space<semaphore_mem>> -> memref<!tpu.dma_semaphore, #tpu.memory_space<semaphore_mem>>
      tpu.enqueue_dma source(%129 : memref<1x128xf32, #tpu.memory_space<any>>) target(%131 : memref<1x128xf32, #tpu.memory_space<vmem>>) target_semaphore(%133 : memref<!tpu.dma_semaphore, #tpu.memory_space<semaphore_mem>>)
      %c6_i32_95 = arith.constant 6 : i32
      %134 = arith.addi %73, %c6_i32_95 : i32
      %135 = arith.index_cast %134 : i32 to index
      %136 = memref.load %arg1[%135] : memref<16xi32, #tpu.memory_space<smem>>
      %c0_i32_96 = arith.constant 0 : i32
      %137 = arith.maxsi %136, %c0_i32_96 : i32
      %c255_i32_97 = arith.constant 255 : i32
      %138 = arith.minsi %137, %c255_i32_97 : i32
      %c6_i32_98 = arith.constant 6 : i32
      %c0_i32_99 = arith.constant 0 : i32
      %139 = tpu.memref_slice %arg2[%138, %c0_i32_99] : memref<256x128xf32, #tpu.memory_space<any>> -> memref<1x128xf32, #tpu.memory_space<any>>
      %c6_i32_100 = arith.constant 6 : i32
      %c0_i32_101 = arith.constant 0 : i32
      %140 = tpu.memref_slice %arg4[%72, %c6_i32_100, %c0_i32_101] : memref<2x8x128xf32, #tpu.memory_space<vmem>> -> memref<1x1x128xf32, #tpu.memory_space<vmem>>
      %141 = tpu.memref_squeeze %140 : memref<1x1x128xf32, #tpu.memory_space<vmem>> -> memref<1x128xf32, #tpu.memory_space<vmem>>
      %142 = tpu.memref_slice %arg5[%72, %c6_i32_98] : memref<2x8x!tpu.dma_semaphore, #tpu.memory_space<semaphore_mem>> -> memref<1x1x!tpu.dma_semaphore, #tpu.memory_space<semaphore_mem>>
      %143 = tpu.memref_squeeze %142 : memref<1x1x!tpu.dma_semaphore, #tpu.memory_space<semaphore_mem>> -> memref<!tpu.dma_semaphore, #tpu.memory_space<semaphore_mem>>
      tpu.enqueue_dma source(%139 : memref<1x128xf32, #tpu.memory_space<any>>) target(%141 : memref<1x128xf32, #tpu.memory_space<vmem>>) target_semaphore(%143 : memref<!tpu.dma_semaphore, #tpu.memory_space<semaphore_mem>>)
      %c7_i32_102 = arith.constant 7 : i32
      %144 = arith.addi %73, %c7_i32_102 : i32
      %145 = arith.index_cast %144 : i32 to index
      %146 = memref.load %arg1[%145] : memref<16xi32, #tpu.memory_space<smem>>
      %c0_i32_103 = arith.constant 0 : i32
      %147 = arith.maxsi %146, %c0_i32_103 : i32
      %c255_i32_104 = arith.constant 255 : i32
      %148 = arith.minsi %147, %c255_i32_104 : i32
      %c7_i32_105 = arith.constant 7 : i32
      %c0_i32_106 = arith.constant 0 : i32
      %149 = tpu.memref_slice %arg2[%148, %c0_i32_106] : memref<256x128xf32, #tpu.memory_space<any>> -> memref<1x128xf32, #tpu.memory_space<any>>
      %c7_i32_107 = arith.constant 7 : i32
      %c0_i32_108 = arith.constant 0 : i32
      %150 = tpu.memref_slice %arg4[%72, %c7_i32_107, %c0_i32_108] : memref<2x8x128xf32, #tpu.memory_space<vmem>> -> memref<1x1x128xf32, #tpu.memory_space<vmem>>
      %151 = tpu.memref_squeeze %150 : memref<1x1x128xf32, #tpu.memory_space<vmem>> -> memref<1x128xf32, #tpu.memory_space<vmem>>
      %152 = tpu.memref_slice %arg5[%72, %c7_i32_105] : memref<2x8x!tpu.dma_semaphore, #tpu.memory_space<semaphore_mem>> -> memref<1x1x!tpu.dma_semaphore, #tpu.memory_space<semaphore_mem>>
      %153 = tpu.memref_squeeze %152 : memref<1x1x!tpu.dma_semaphore, #tpu.memory_space<semaphore_mem>> -> memref<!tpu.dma_semaphore, #tpu.memory_space<semaphore_mem>>
      tpu.enqueue_dma source(%149 : memref<1x128xf32, #tpu.memory_space<any>>) target(%151 : memref<1x128xf32, #tpu.memory_space<vmem>>) target_semaphore(%153 : memref<!tpu.dma_semaphore, #tpu.memory_space<semaphore_mem>>)
    } else {
    }
    %c2_i32_2 = arith.constant 2 : i32
    %c0_i32_3 = arith.constant 0 : i32
    %7 = arith.cmpi eq, %c2_i32_2, %c0_i32_3 : i32
    %c1_i32_4 = arith.constant 1 : i32
    %8 = arith.select %7, %c1_i32_4, %c2_i32_2 : i32
    %9 = arith.remsi %arg0, %8 : i32
    %c0_i32_5 = arith.constant 0 : i32
    %10 = arith.cmpi ne, %9, %c0_i32_5 : i32
    %c0_i32_6 = arith.constant 0 : i32
    %11 = arith.cmpi slt, %9, %c0_i32_6 : i32
    %c0_i32_7 = arith.constant 0 : i32
    %12 = arith.cmpi slt, %8, %c0_i32_7 : i32
    %13 = arith.xori %11, %12 : i1
    %14 = arith.andi %13, %10 : i1
    %15 = arith.addi %9, %8 : i32
    %16 = arith.select %14, %15, %9 : i32
    %c0_i32_8 = arith.constant 0 : i32
    %c0_i32_9 = arith.constant 0 : i32
    %c0_i32_10 = arith.constant 0 : i32
    %17 = tpu.memref_slice %arg2[%c0_i32_9, %c0_i32_10] : memref<256x128xf32, #tpu.memory_space<any>> -> memref<1x128xf32, #tpu.memory_space<any>>
    %c0_i32_11 = arith.constant 0 : i32
    %c0_i32_12 = arith.constant 0 : i32
    %18 = tpu.memref_slice %arg4[%16, %c0_i32_11, %c0_i32_12] : memref<2x8x128xf32, #tpu.memory_space<vmem>> -> memref<1x1x128xf32, #tpu.memory_space<vmem>>
    %19 = tpu.memref_squeeze %18 : memref<1x1x128xf32, #tpu.memory_space<vmem>> -> memref<1x128xf32, #tpu.memory_space<vmem>>
    %20 = tpu.memref_slice %arg5[%16, %c0_i32_8] : memref<2x8x!tpu.dma_semaphore, #tpu.memory_space<semaphore_mem>> -> memref<1x1x!tpu.dma_semaphore, #tpu.memory_space<semaphore_mem>>
    %21 = tpu.memref_squeeze %20 : memref<1x1x!tpu.dma_semaphore, #tpu.memory_space<semaphore_mem>> -> memref<!tpu.dma_semaphore, #tpu.memory_space<semaphore_mem>>
    tpu.wait_dma2 semaphore(%21 : memref<!tpu.dma_semaphore, #tpu.memory_space<semaphore_mem>>) src(%17 : memref<1x128xf32, #tpu.memory_space<any>>) dst(%19 : memref<1x128xf32, #tpu.memory_space<vmem>>)
    %c1_i32_13 = arith.constant 1 : i32
    %c0_i32_14 = arith.constant 0 : i32
    %c0_i32_15 = arith.constant 0 : i32
    %22 = tpu.memref_slice %arg2[%c0_i32_14, %c0_i32_15] : memref<256x128xf32, #tpu.memory_space<any>> -> memref<1x128xf32, #tpu.memory_space<any>>
    %c1_i32_16 = arith.constant 1 : i32
    %c0_i32_17 = arith.constant 0 : i32
    %23 = tpu.memref_slice %arg4[%16, %c1_i32_16, %c0_i32_17] : memref<2x8x128xf32, #tpu.memory_space<vmem>> -> memref<1x1x128xf32, #tpu.memory_space<vmem>>
    %24 = tpu.memref_squeeze %23 : memref<1x1x128xf32, #tpu.memory_space<vmem>> -> memref<1x128xf32, #tpu.memory_space<vmem>>
    %25 = tpu.memref_slice %arg5[%16, %c1_i32_13] : memref<2x8x!tpu.dma_semaphore, #tpu.memory_space<semaphore_mem>> -> memref<1x1x!tpu.dma_semaphore, #tpu.memory_space<semaphore_mem>>
    %26 = tpu.memref_squeeze %25 : memref<1x1x!tpu.dma_semaphore, #tpu.memory_space<semaphore_mem>> -> memref<!tpu.dma_semaphore, #tpu.memory_space<semaphore_mem>>
    tpu.wait_dma2 semaphore(%26 : memref<!tpu.dma_semaphore, #tpu.memory_space<semaphore_mem>>) src(%22 : memref<1x128xf32, #tpu.memory_space<any>>) dst(%24 : memref<1x128xf32, #tpu.memory_space<vmem>>)
    %c2_i32_18 = arith.constant 2 : i32
    %c0_i32_19 = arith.constant 0 : i32
    %c0_i32_20 = arith.constant 0 : i32
    %27 = tpu.memref_slice %arg2[%c0_i32_19, %c0_i32_20] : memref<256x128xf32, #tpu.memory_space<any>> -> memref<1x128xf32, #tpu.memory_space<any>>
    %c2_i32_21 = arith.constant 2 : i32
    %c0_i32_22 = arith.constant 0 : i32
    %28 = tpu.memref_slice %arg4[%16, %c2_i32_21, %c0_i32_22] : memref<2x8x128xf32, #tpu.memory_space<vmem>> -> memref<1x1x128xf32, #tpu.memory_space<vmem>>
    %29 = tpu.memref_squeeze %28 : memref<1x1x128xf32, #tpu.memory_space<vmem>> -> memref<1x128xf32, #tpu.memory_space<vmem>>
    %30 = tpu.memref_slice %arg5[%16, %c2_i32_18] : memref<2x8x!tpu.dma_semaphore, #tpu.memory_space<semaphore_mem>> -> memref<1x1x!tpu.dma_semaphore, #tpu.memory_space<semaphore_mem>>
    %31 = tpu.memref_squeeze %30 : memref<1x1x!tpu.dma_semaphore, #tpu.memory_space<semaphore_mem>> -> memref<!tpu.dma_semaphore, #tpu.memory_space<semaphore_mem>>
    tpu.wait_dma2 semaphore(%31 : memref<!tpu.dma_semaphore, #tpu.memory_space<semaphore_mem>>) src(%27 : memref<1x128xf32, #tpu.memory_space<any>>) dst(%29 : memref<1x128xf32, #tpu.memory_space<vmem>>)
    %c3_i32 = arith.constant 3 : i32
    %c0_i32_23 = arith.constant 0 : i32
    %c0_i32_24 = arith.constant 0 : i32
    %32 = tpu.memref_slice %arg2[%c0_i32_23, %c0_i32_24] : memref<256x128xf32, #tpu.memory_space<any>> -> memref<1x128xf32, #tpu.memory_space<any>>
    %c3_i32_25 = arith.constant 3 : i32
    %c0_i32_26 = arith.constant 0 : i32
    %33 = tpu.memref_slice %arg4[%16, %c3_i32_25, %c0_i32_26] : memref<2x8x128xf32, #tpu.memory_space<vmem>> -> memref<1x1x128xf32, #tpu.memory_space<vmem>>
    %34 = tpu.memref_squeeze %33 : memref<1x1x128xf32, #tpu.memory_space<vmem>> -> memref<1x128xf32, #tpu.memory_space<vmem>>
    %35 = tpu.memref_slice %arg5[%16, %c3_i32] : memref<2x8x!tpu.dma_semaphore, #tpu.memory_space<semaphore_mem>> -> memref<1x1x!tpu.dma_semaphore, #tpu.memory_space<semaphore_mem>>
    %36 = tpu.memref_squeeze %35 : memref<1x1x!tpu.dma_semaphore, #tpu.memory_space<semaphore_mem>> -> memref<!tpu.dma_semaphore, #tpu.memory_space<semaphore_mem>>
    tpu.wait_dma2 semaphore(%36 : memref<!tpu.dma_semaphore, #tpu.memory_space<semaphore_mem>>) src(%32 : memref<1x128xf32, #tpu.memory_space<any>>) dst(%34 : memref<1x128xf32, #tpu.memory_space<vmem>>)
    %c4_i32 = arith.constant 4 : i32
    %c0_i32_27 = arith.constant 0 : i32
    %c0_i32_28 = arith.constant 0 : i32
    %37 = tpu.memref_slice %arg2[%c0_i32_27, %c0_i32_28] : memref<256x128xf32, #tpu.memory_space<any>> -> memref<1x128xf32, #tpu.memory_space<any>>
    %c4_i32_29 = arith.constant 4 : i32
    %c0_i32_30 = arith.constant 0 : i32
    %38 = tpu.memref_slice %arg4[%16, %c4_i32_29, %c0_i32_30] : memref<2x8x128xf32, #tpu.memory_space<vmem>> -> memref<1x1x128xf32, #tpu.memory_space<vmem>>
    %39 = tpu.memref_squeeze %38 : memref<1x1x128xf32, #tpu.memory_space<vmem>> -> memref<1x128xf32, #tpu.memory_space<vmem>>
    %40 = tpu.memref_slice %arg5[%16, %c4_i32] : memref<2x8x!tpu.dma_semaphore, #tpu.memory_space<semaphore_mem>> -> memref<1x1x!tpu.dma_semaphore, #tpu.memory_space<semaphore_mem>>
    %41 = tpu.memref_squeeze %40 : memref<1x1x!tpu.dma_semaphore, #tpu.memory_space<semaphore_mem>> -> memref<!tpu.dma_semaphore, #tpu.memory_space<semaphore_mem>>
    tpu.wait_dma2 semaphore(%41 : memref<!tpu.dma_semaphore, #tpu.memory_space<semaphore_mem>>) src(%37 : memref<1x128xf32, #tpu.memory_space<any>>) dst(%39 : memref<1x128xf32, #tpu.memory_space<vmem>>)
    %c5_i32 = arith.constant 5 : i32
    %c0_i32_31 = arith.constant 0 : i32
    %c0_i32_32 = arith.constant 0 : i32
    %42 = tpu.memref_slice %arg2[%c0_i32_31, %c0_i32_32] : memref<256x128xf32, #tpu.memory_space<any>> -> memref<1x128xf32, #tpu.memory_space<any>>
    %c5_i32_33 = arith.constant 5 : i32
    %c0_i32_34 = arith.constant 0 : i32
    %43 = tpu.memref_slice %arg4[%16, %c5_i32_33, %c0_i32_34] : memref<2x8x128xf32, #tpu.memory_space<vmem>> -> memref<1x1x128xf32, #tpu.memory_space<vmem>>
    %44 = tpu.memref_squeeze %43 : memref<1x1x128xf32, #tpu.memory_space<vmem>> -> memref<1x128xf32, #tpu.memory_space<vmem>>
    %45 = tpu.memref_slice %arg5[%16, %c5_i32] : memref<2x8x!tpu.dma_semaphore, #tpu.memory_space<semaphore_mem>> -> memref<1x1x!tpu.dma_semaphore, #tpu.memory_space<semaphore_mem>>
    %46 = tpu.memref_squeeze %45 : memref<1x1x!tpu.dma_semaphore, #tpu.memory_space<semaphore_mem>> -> memref<!tpu.dma_semaphore, #tpu.memory_space<semaphore_mem>>
    tpu.wait_dma2 semaphore(%46 : memref<!tpu.dma_semaphore, #tpu.memory_space<semaphore_mem>>) src(%42 : memref<1x128xf32, #tpu.memory_space<any>>) dst(%44 : memref<1x128xf32, #tpu.memory_space<vmem>>)
    %c6_i32 = arith.constant 6 : i32
    %c0_i32_35 = arith.constant 0 : i32
    %c0_i32_36 = arith.constant 0 : i32
    %47 = tpu.memref_slice %arg2[%c0_i32_35, %c0_i32_36] : memref<256x128xf32, #tpu.memory_space<any>> -> memref<1x128xf32, #tpu.memory_space<any>>
    %c6_i32_37 = arith.constant 6 : i32
    %c0_i32_38 = arith.constant 0 : i32
    %48 = tpu.memref_slice %arg4[%16, %c6_i32_37, %c0_i32_38] : memref<2x8x128xf32, #tpu.memory_space<vmem>> -> memref<1x1x128xf32, #tpu.memory_space<vmem>>
    %49 = tpu.memref_squeeze %48 : memref<1x1x128xf32, #tpu.memory_space<vmem>> -> memref<1x128xf32, #tpu.memory_space<vmem>>
    %50 = tpu.memref_slice %arg5[%16, %c6_i32] : memref<2x8x!tpu.dma_semaphore, #tpu.memory_space<semaphore_mem>> -> memref<1x1x!tpu.dma_semaphore, #tpu.memory_space<semaphore_mem>>
    %51 = tpu.memref_squeeze %50 : memref<1x1x!tpu.dma_semaphore, #tpu.memory_space<semaphore_mem>> -> memref<!tpu.dma_semaphore, #tpu.memory_space<semaphore_mem>>
    tpu.wait_dma2 semaphore(%51 : memref<!tpu.dma_semaphore, #tpu.memory_space<semaphore_mem>>) src(%47 : memref<1x128xf32, #tpu.memory_space<any>>) dst(%49 : memref<1x128xf32, #tpu.memory_space<vmem>>)
    %c7_i32 = arith.constant 7 : i32
    %c0_i32_39 = arith.constant 0 : i32
    %c0_i32_40 = arith.constant 0 : i32
    %52 = tpu.memref_slice %arg2[%c0_i32_39, %c0_i32_40] : memref<256x128xf32, #tpu.memory_space<any>> -> memref<1x128xf32, #tpu.memory_space<any>>
    %c7_i32_41 = arith.constant 7 : i32
    %c0_i32_42 = arith.constant 0 : i32
    %53 = tpu.memref_slice %arg4[%16, %c7_i32_41, %c0_i32_42] : memref<2x8x128xf32, #tpu.memory_space<vmem>> -> memref<1x1x128xf32, #tpu.memory_space<vmem>>
    %54 = tpu.memref_squeeze %53 : memref<1x1x128xf32, #tpu.memory_space<vmem>> -> memref<1x128xf32, #tpu.memory_space<vmem>>
    %55 = tpu.memref_slice %arg5[%16, %c7_i32] : memref<2x8x!tpu.dma_semaphore, #tpu.memory_space<semaphore_mem>> -> memref<1x1x!tpu.dma_semaphore, #tpu.memory_space<semaphore_mem>>
    %56 = tpu.memref_squeeze %55 : memref<1x1x!tpu.dma_semaphore, #tpu.memory_space<semaphore_mem>> -> memref<!tpu.dma_semaphore, #tpu.memory_space<semaphore_mem>>
    tpu.wait_dma2 semaphore(%56 : memref<!tpu.dma_semaphore, #tpu.memory_space<semaphore_mem>>) src(%52 : memref<1x128xf32, #tpu.memory_space<any>>) dst(%54 : memref<1x128xf32, #tpu.memory_space<vmem>>)
    %57 = arith.index_cast %16 : i32 to index
    %c0 = arith.constant 0 : index
    %c0_43 = arith.constant 0 : index
    %58 = vector.load %arg4[%57, %c0, %c0_43] : memref<2x8x128xf32, #tpu.memory_space<vmem>>, vector<1x8x128xf32>
    %59 = vector.shape_cast %58 : vector<1x8x128xf32> to vector<8x128xf32>
    %c0_44 = arith.constant 0 : index
    %c0_45 = arith.constant 0 : index
    %60 = vector.load %arg3[%c0_44, %c0_45] : memref<8x128xf32, #tpu.memory_space<vmem>>, vector<8x128xf32>
    tpu.vector_store %arg3[%c0_44, %c0_45], %59 {strides = array<i32>} : memref<8x128xf32, #tpu.memory_space<vmem>>, vector<8x128xf32>,
    return
  }
  func.func @transform_1(%arg0: i32, %arg1: memref<16xi32, #tpu.memory_space<smem>>) -> (i32, i32) {
    %c0_i32 = arith.constant 0 : i32
    %c0_i32_0 = arith.constant 0 : i32
    return %arg0, %c0_i32 : i32, i32
  }
}

</mosaic_0001>

<llo_original>
// kernel: embedding_lookup.1
$region0: #{embedding_lookup.1}
  #allocation0 [shape = 'u32[]', space=smem, size = 0x4, offset = 0x4, fixed_abs, tag = 'smem constant byte address 0x4 - core index']
  #allocation1 [shape = 'u32[144,128]{1,0:T(1,128)}', space=vmem, size = 0x12000, scoped, tag = 'internal scratch']
  #allocation2 [shape = 'f32[2,8,128]{2,1,0:T(8,128)}', space=vmem, size = 0x2000, scoped, tag = 'scratch operand']
  #allocation3 [shape = 's32[16]{0}', space=sflag, size = 0x40, scoped, tag = 'scratch operand']
  #allocation4 [shape = 's32[1]{0}', space=sflag, size = 0x4, scoped, tag = 'scoped memory for embedding_lookup.1']
  #allocation5 [shape = 'u8[512]{0}', space=smem, size = 0x200, scoped, tag = 'prefetched SMEM operand 0']
  #allocation8 [shape = 's32[]', space=sflag, size = 0x4, offset = 0, fixed_abs, tag = 'sflag constant byte address 0x0 - dummy sync flag']
  #allocation9 [shape = 's32[]', space=sflag, size = 0x4, offset = 0, fixed_abs, tag = 'sflag constant byte address 0x0 - dummy sync flag']
  #allocation10 [shape = 'u32[]', space=smem, size = 0x4, offset = 0x44, fixed_abs, tag = 'smem constant byte address 0x44 - assertion arg 0']
  #allocation11 [shape = 'u32[]', space=smem, size = 0x4, offset = 0x48, fixed_abs, tag = 'smem constant byte address 0x48 - assertion arg 1']
  #allocation12 [shape = 's32[]', space=sflag, size = 0x4, offset = 0, fixed_abs, tag = 'sflag constant byte address 0x0 - dummy sync flag']
  #allocation13 [shape = 's32[]', space=sflag, size = 0x4, offset = 0, fixed_abs, tag = 'sflag constant byte address 0x0 - dummy sync flag']
  #allocation14 [shape = 's32[]', space=sflag, size = 0x4, offset = 0, fixed_abs, tag = 'sflag constant byte address 0x0 - dummy sync flag']
  #allocation15 [shape = 's32[]', space=sflag, size = 0x4, offset = 0, fixed_abs, tag = 'sflag constant byte address 0x0 - dummy sync flag']
  #allocation16 [shape = 's32[]', space=sflag, size = 0x4, offset = 0, fixed_abs, tag = 'sflag constant byte address 0x0 - dummy sync flag']
  #allocation17 [shape = 's32[]', space=sflag, size = 0x4, offset = 0, fixed_abs, tag = 'sflag constant byte address 0x0 - dummy sync flag']
  #allocation18 [shape = 's32[]', space=sflag, size = 0x4, offset = 0, fixed_abs, tag = 'sflag constant byte address 0x0 - dummy sync flag']
  #allocation19 [shape = 's32[]', space=sflag, size = 0x4, offset = 0, fixed_abs, tag = 'sflag constant byte address 0x0 - dummy sync flag']
  #allocation20 [shape = 's32[]', space=sflag, size = 0x4, offset = 0, fixed_abs, tag = 'sflag constant byte address 0x0 - dummy sync flag']
  #allocation21 [shape = 's32[]', space=sflag, size = 0x4, offset = 0, fixed_abs, tag = 'sflag constant byte address 0x0 - dummy sync flag']
  #allocation22 [shape = 's32[]', space=sflag, size = 0x4, offset = 0, fixed_abs, tag = 'sflag constant byte address 0x0 - dummy sync flag']
  #allocation23 [shape = 's32[]', space=sflag, size = 0x4, offset = 0, fixed_abs, tag = 'sflag constant byte address 0x0 - dummy sync flag']
  #allocation24 [shape = 's32[]', space=sflag, size = 0x4, offset = 0, fixed_abs, tag = 'sflag constant byte address 0x0 - dummy sync flag']
  #allocation25 [shape = 's32[]', space=sflag, size = 0x4, offset = 0, fixed_abs, tag = 'sflag constant byte address 0x0 - dummy sync flag']
  #allocation26 [shape = 's32[]', space=sflag, size = 0x4, offset = 0, fixed_abs, tag = 'sflag constant byte address 0x0 - dummy sync flag']
  #allocation27 [shape = 's32[]', space=sflag, size = 0x4, offset = 0, fixed_abs, tag = 'sflag constant byte address 0x0 - dummy sync flag']
  #allocation28 [shape = 's32[]', space=sflag, size = 0x4, offset = 0, fixed_abs, tag = 'sflag constant byte address 0x0 - dummy sync flag']
  #allocation29 [shape = 's32[]', space=sflag, size = 0x4, offset = 0, fixed_abs, tag = 'sflag constant byte address 0x0 - dummy sync flag']
  #allocation30 [shape = 's32[]', space=sflag, size = 0x4, offset = 0, fixed_abs, tag = 'sflag constant byte address 0x0 - dummy sync flag']
  #allocation31 [shape = 's32[]', space=sflag, size = 0x4, offset = 0, fixed_abs, tag = 'sflag constant byte address 0x0 - dummy sync flag']
  #allocation32 [shape = 's32[]', space=sflag, size = 0x4, offset = 0, fixed_abs, tag = 'sflag constant byte address 0x0 - dummy sync flag']
  #allocation33 [shape = 's32[]', space=sflag, size = 0x4, offset = 0, fixed_abs, tag = 'sflag constant byte address 0x0 - dummy sync flag']
  #allocation34 [shape = 's32[]', space=sflag, size = 0x4, offset = 0, fixed_abs, tag = 'sflag constant byte address 0x0 - dummy sync flag']
  #allocation35 [shape = 's32[]', space=sflag, size = 0x4, offset = 0, fixed_abs, tag = 'sflag constant byte address 0x0 - dummy sync flag']
  #allocation36 [shape = 's32[]', space=sflag, size = 0x4, offset = 0, fixed_abs, tag = 'sflag constant byte address 0x0 - dummy sync flag']
  #allocation37 [shape = 's32[]', space=sflag, size = 0x4, offset = 0, fixed_abs, tag = 'sflag constant byte address 0x0 - dummy sync flag']
  #allocation38 [shape = 's32[]', space=sflag, size = 0x4, offset = 0, fixed_abs, tag = 'sflag constant byte address 0x0 - dummy sync flag']
  #allocation39 [shape = 's32[]', space=sflag, size = 0x4, offset = 0, fixed_abs, tag = 'sflag constant byte address 0x0 - dummy sync flag']
  #allocation40 [shape = 's32[]', space=sflag, size = 0x4, offset = 0, fixed_abs, tag = 'sflag constant byte address 0x0 - dummy sync flag']
  #allocation41 [shape = 's32[]', space=sflag, size = 0x4, offset = 0, fixed_abs, tag = 'sflag constant byte address 0x0 - dummy sync flag']
  %s0 = inlined_call_operand.vmem [shape: s32[16], index: 0, kind: input, shape index: {}]
  %s1 = inlined_call_operand.hbm [shape: f32[256,128], index: 1, kind: input, shape index: {}]
  %s2 = inlined_call_operand.hbm [shape: f32[16,128], index: 2, kind: output, shape index: {}]
  %s3 = sld [smem:[#allocation0]]
  $region97: #{embedding_lookup.1} parent=0
    _
  %s5 = ssub.s32 1, %s3
  %s6 = scalar_select 0, %s5, %s3
  %s7 = sshll.u32 %s0, 4
  %s8 = int_to_ptr.vmem [resolvable:$true] %s7
  %10 = dma.vmem_to_smem %s8, 16, [#allocation5], [#allocation4]
  %11 = dma.done [#allocation4], 16
  %12 = sfence
  $region1: #{embedding_lookup.1} parent=0
    #allocation6 [shape = 'u8[8192]{0}', space=vmem, size = 0x2000, scoped, tag = 'output window, operand 0']
    #allocation7 [shape = 's32[2]{0}', space=sflag, size = 0x8, scoped, tag = 'scoped memory for embedding_lookup.1']
    %13 = vsyncpa [#allocation7], 0
    %s14 = scalar_lea.sflag [#allocation7], 1
    %15 = vsyncpa %s14, 0
    loop: start=0, step=1, limit=3
    $region2: #{embedding_lookup.1} parent=1 // loop_pre_header
      _
    $region3: #{embedding_lookup.1} parent=1 // loop_header
      %s17 = sphi 0, %s21
      %p18 = scmp.ge.s32.totalorder %s17, 3
      %s26 = sphi 0, %s28
      %s29 = sphi 0, %s26
      %s39 = sphi 0, %s29
    $region4: #{embedding_lookup.1} parent=1 // loop_header_branch
      %20 = sbr.rel (%p18) target = $region8
    $region5: #{embedding_lookup.1} parent=1 // loop_body
      %s22 = ssub.s32 %s17, 1
      %s23 = sadd.s32 %s17, 1
      %s24 = ssub.s32 %s17, %s23
      %p25 = scmp.eq.s32.totalorder %s24, 0
      %s27 = sadd.s32 %s26, 1
      %s28 = scalar_select %p25, %s26, %s27
      %p30 = pneg %p25
      %p31 = scmp.eq.s32.totalorder %s17, 1
      %p32 = por %p30, %p31
      %p33 = scmp.ne.s32.totalorder %s26, %s29
      %p34 = scmp.eq.s32.totalorder %s17, 0
      %p35 = por %p33, %p34
      %p36 = scmp.ne.s32.totalorder %s26, %s29
      %p37 = scmp.eq.s32.totalorder %s22, 1
      %p38 = por %p36, %p37
      %p40 = scmp.ne.s32.totalorder %s29, %s39
      %p41 = scmp.eq.s32.totalorder %s22, 0
      %p42 = por %p40, %p41
      %p43 = scmp.lt.s32.totalorder %s17, 2
      // Predicated region
      $region9: #{embedding_lookup.1} parent=5 // pred_check
        %p44 = pneg %p43
      $region10: #{embedding_lookup.1} parent=5 // pred_check_branch
        %46 = sbr.rel (%p44) target = $region12
      $region11: #{embedding_lookup.1} parent=5 // pred_region
        %p47 = pneg %p35
        %p48 = pneg %p32
        %s49 = sand.u32 %s26, 1
        %s50 = scalar_lea.sflag [#allocation7], %s49
        %s51 = sand.u32 %s26, 1
        %s52 = smul.addr %s51, 8
        %s53 = scalar_lea.vmem [#allocation6], %s52
        %p54 = scmp.eq.s32.totalorder %s17, 0
        // Predicated region
        $region13: #{embedding_lookup.1} parent=11 // pred_check
          %p55 = pneg %p54
        $region14: #{embedding_lookup.1} parent=11 // pred_check_branch
          %57 = sbr.rel (%p55) target = $region16
        $region15: #{embedding_lookup.1} parent=11 // pred_region
          %s58 = sld [smem:[#allocation5]]
          %p59 = scmp.gt.s32.totalorder %s58, 0
          %s60 = scalar_select %p59, %s58, 0
          %p61 = scmp.lt.s32.totalorder %s60, 255
          %s62 = scalar_select %p61, %s60, 255
          %s63 = smul.addr %s62, 16
          %s64 = scalar_lea.hbm %s1, %s63
          // Predicated region
          $region17: #{embedding_lookup.1} parent=15 // pred_check
            _
          $region18: #{embedding_lookup.1} parent=15 // pred_check_branch
            %66 = sbr.rel target = $region20
          $region19: #{embedding_lookup.1} parent=15 // pred_region
            %67 = sst [smem:[#allocation10]] [#allocation9]
            %68 = sst [smem:[#allocation11]] [#allocation8]
          $region20: #{embedding_lookup.1} parent=15 // pred_fallthru
            _
          %70 = shalt.err (0)
          %s72 = sshll.u32 [#allocation2], 4
          %s73 = int_to_ptr.vmem [resolvable:$true] %s72
          %75 = dma.hbm_to_vmem [thread:$0]  %s64, 16, %s73, [#allocation3]
          %s76 = sld [smem:[#allocation5 + $0x1]]
          %p77 = scmp.gt.s32.totalorder %s76, 0
          %s78 = scalar_select %p77, %s76, 0
          %p79 = scmp.lt.s32.totalorder %s78, 255
          %s80 = scalar_select %p79, %s78, 255
          %s81 = smul.addr %s80, 16
          %s82 = scalar_lea.hbm %s1, %s81
          %s83 = scalar_lea.vmem [#allocation2], 1
          %s84 = scalar_lea.sflag [#allocation3], 1
          // Predicated region
          $region21: #{embedding_lookup.1} parent=15 // pred_check
            _
          $region22: #{embedding_lookup.1} parent=15 // pred_check_branch
            %86 = sbr.rel target = $region24
          $region23: #{embedding_lookup.1} parent=15 // pred_region
            %87 = sst [smem:[#allocation10]] [#allocation13]
            %88 = sst [smem:[#allocation11]] [#allocation12]
          $region24: #{embedding_lookup.1} parent=15 // pred_fallthru
            _
          %90 = shalt.err (0)
          %s92 = sshll.u32 %s83, 4
          %s93 = int_to_ptr.vmem [resolvable:$true] %s92
          %95 = dma.hbm_to_vmem [thread:$0]  %s82, 16, %s93, %s84
          %s96 = sld [smem:[#allocation5 + $0x2]]
          %p97 = scmp.gt.s32.totalorder %s96, 0
          %s98 = scalar_select %p97, %s96, 0
          %p99 = scmp.lt.s32.totalorder %s98, 255
          %s100 = scalar_select %p99, %s98, 255
          %s101 = smul.addr %s100, 16
          %s102 = scalar_lea.hbm %s1, %s101
          %s103 = scalar_lea.vmem [#allocation2], 2
          %s104 = scalar_lea.sflag [#allocation3], 2
          // Predicated region
          $region25: #{embedding_lookup.1} parent=15 // pred_check
            _
          $region26: #{embedding_lookup.1} parent=15 // pred_check_branch
            %106 = sbr.rel target = $region28
          $region27: #{embedding_lookup.1} parent=15 // pred_region
            %107 = sst [smem:[#allocation10]] [#allocation15]
            %108 = sst [smem:[#allocation11]] [#allocation14]
          $region28: #{embedding_lookup.1} parent=15 // pred_fallthru
            _
          %110 = shalt.err (0)
          %s112 = sshll.u32 %s103, 4
          %s113 = int_to_ptr.vmem [resolvable:$true] %s112
          %115 = dma.hbm_to_vmem [thread:$0]  %s102, 16, %s113, %s104
          %s116 = sld [smem:[#allocation5 + $0x3]]
          %p117 = scmp.gt.s32.totalorder %s116, 0
          %s118 = scalar_select %p117, %s116, 0
          %p119 = scmp.lt.s32.totalorder %s118, 255
          %s120 = scalar_select %p119, %s118, 255
          %s121 = smul.addr %s120, 16
          %s122 = scalar_lea.hbm %s1, %s121
          %s123 = scalar_lea.vmem [#allocation2], 3
          %s124 = scalar_lea.sflag [#allocation3], 3
          // Predicated region
          $region29: #{embedding_lookup.1} parent=15 // pred_check
            _
          $region30: #{embedding_lookup.1} parent=15 // pred_check_branch
            %126 = sbr.rel target = $region32
          $region31: #{embedding_lookup.1} parent=15 // pred_region
            %127 = sst [smem:[#allocation10]] [#allocation17]
            %128 = sst [smem:[#allocation11]] [#allocation16]
          $region32: #{embedding_lookup.1} parent=15 // pred_fallthru
            _
          %130 = shalt.err (0)
          %s132 = sshll.u32 %s123, 4
          %s133 = int_to_ptr.vmem [resolvable:$true] %s132
          %135 = dma.hbm_to_vmem [thread:$0]  %s122, 16, %s133, %s124
          %s136 = sld [smem:[#allocation5 + $0x4]]
          %p137 = scmp.gt.s32.totalorder %s136, 0
          %s138 = scalar_select %p137, %s136, 0
          %p139 = scmp.lt.s32.totalorder %s138, 255
          %s140 = scalar_select %p139, %s138, 255
          %s141 = smul.addr %s140, 16
          %s142 = scalar_lea.hbm %s1, %s141
          %s143 = scalar_lea.vmem [#allocation2], 4
          %s144 = scalar_lea.sflag [#allocation3], 4
          // Predicated region
          $region33: #{embedding_lookup.1} parent=15 // pred_check
            _
          $region34: #{embedding_lookup.1} parent=15 // pred_check_branch
            %146 = sbr.rel target = $region36
          $region35: #{embedding_lookup.1} parent=15 // pred_region
            %147 = sst [smem:[#allocation10]] [#allocation19]
            %148 = sst [smem:[#allocation11]] [#allocation18]
          $region36: #{embedding_lookup.1} parent=15 // pred_fallthru
            _
          %150 = shalt.err (0)
          %s152 = sshll.u32 %s143, 4
          %s153 = int_to_ptr.vmem [resolvable:$true] %s152
          %155 = dma.hbm_to_vmem [thread:$0]  %s142, 16, %s153, %s144
          %s156 = sld [smem:[#allocation5 + $0x5]]
          %p157 = scmp.gt.s32.totalorder %s156, 0
          %s158 = scalar_select %p157, %s156, 0
          %p159 = scmp.lt.s32.totalorder %s158, 255
          %s160 = scalar_select %p159, %s158, 255
          %s161 = smul.addr %s160, 16
          %s162 = scalar_lea.hbm %s1, %s161
          %s163 = scalar_lea.vmem [#allocation2], 5
          %s164 = scalar_lea.sflag [#allocation3], 5
          // Predicated region
          $region37: #{embedding_lookup.1} parent=15 // pred_check
            _
          $region38: #{embedding_lookup.1} parent=15 // pred_check_branch
            %166 = sbr.rel target = $region40
          $region39: #{embedding_lookup.1} parent=15 // pred_region
            %167 = sst [smem:[#allocation10]] [#allocation21]
            %168 = sst [smem:[#allocation11]] [#allocation20]
          $region40: #{embedding_lookup.1} parent=15 // pred_fallthru
            _
          %170 = shalt.err (0)
          %s172 = sshll.u32 %s163, 4
          %s173 = int_to_ptr.vmem [resolvable:$true] %s172
          %175 = dma.hbm_to_vmem [thread:$0]  %s162, 16, %s173, %s164
          %s176 = sld [smem:[#allocation5 + $0x6]]
          %p177 = scmp.gt.s32.totalorder %s176, 0
          %s178 = scalar_select %p177, %s176, 0
          %p179 = scmp.lt.s32.totalorder %s178, 255
          %s180 = scalar_select %p179, %s178, 255
          %s181 = smul.addr %s180, 16
          %s182 = scalar_lea.hbm %s1, %s181
          %s183 = scalar_lea.vmem [#allocation2], 6
          %s184 = scalar_lea.sflag [#allocation3], 6
          // Predicated region
          $region41: #{embedding_lookup.1} parent=15 // pred_check
            _
          $region42: #{embedding_lookup.1} parent=15 // pred_check_branch
            %186 = sbr.rel target = $region44
          $region43: #{embedding_lookup.1} parent=15 // pred_region
            %187 = sst [smem:[#allocation10]] [#allocation23]
            %188 = sst [smem:[#allocation11]] [#allocation22]
          $region44: #{embedding_lookup.1} parent=15 // pred_fallthru
            _
          %190 = shalt.err (0)
          %s192 = sshll.u32 %s183, 4
          %s193 = int_to_ptr.vmem [resolvable:$true] %s192
          %195 = dma.hbm_to_vmem [thread:$0]  %s182, 16, %s193, %s184
          %s196 = sld [smem:[#allocation5 + $0x7]]
          %p197 = scmp.gt.s32.totalorder %s196, 0
          %s198 = scalar_select %p197, %s196, 0
          %p199 = scmp.lt.s32.totalorder %s198, 255
          %s200 = scalar_select %p199, %s198, 255
          %s201 = smul.addr %s200, 16
          %s202 = scalar_lea.hbm %s1, %s201
          %s203 = scalar_lea.vmem [#allocation2], 7
          %s204 = scalar_lea.sflag [#allocation3], 7
          // Predicated region
          $region45: #{embedding_lookup.1} parent=15 // pred_check
            _
          $region46: #{embedding_lookup.1} parent=15 // pred_check_branch
            %206 = sbr.rel target = $region48
          $region47: #{embedding_lookup.1} parent=15 // pred_region
            %207 = sst [smem:[#allocation10]] [#allocation25]
            %208 = sst [smem:[#allocation11]] [#allocation24]
          $region48: #{embedding_lookup.1} parent=15 // pred_fallthru
            _
          %210 = shalt.err (0)
          %s212 = sshll.u32 %s203, 4
          %s213 = int_to_ptr.vmem [resolvable:$true] %s212
          %215 = dma.hbm_to_vmem [thread:$0]  %s202, 16, %s213, %s204
        $region16: #{embedding_lookup.1} parent=11 // pred_fallthru
          _
        %s216 = sadd.s32 %s17, 1
        %p217 = scmp.lt.s32.totalorder %s216, 2
        // Predicated region
        $region49: #{embedding_lookup.1} parent=11 // pred_check
          %p218 = pneg %p217
        $region50: #{embedding_lookup.1} parent=11 // pred_check_branch
          %220 = sbr.rel (%p218) target = $region52
        $region51: #{embedding_lookup.1} parent=11 // pred_region
          %p221 = scmp.lt.s32.totalorder %s216, 0
          %s222 = ssub.s32 0, %s216
          %s223 = scalar_select %p221, %s222, %s216
          %s224 = sand.u32 %s223, 1
          %s225 = ssub.s32 0, %s224
          %s226 = scalar_select %p221, %s225, %s224
          %p227 = scmp.ne.s32.totalorder %s226, 0
          %p228 = scmp.lt.s32.totalorder %s226, 0
          %p229 = pnand %p228, %p227
          %p230 = pneg %p229
          %s231 = sadd.s32 %s226, 2
          %s232 = scalar_select %p230, %s231, %s226
          %s233 = smul.u32 %s216, 8
          %s234 = sld [smem:[#allocation5 + %s233]]
          %p235 = scmp.gt.s32.totalorder %s234, 0
          %s236 = scalar_select %p235, %s234, 0
          %p237 = scmp.lt.s32.totalorder %s236, 255
          %s238 = scalar_select %p237, %s236, 255
          %s239 = smul.addr %s238, 16
          %s240 = scalar_lea.hbm %s1, %s239
          %s241 = smul.u32 %s232, 8
          %s242 = scalar_lea.vmem [#allocation2], %s241
          %s243 = scalar_lea.sflag [#allocation3], %s241
          // Predicated region
          $region53: #{embedding_lookup.1} parent=51 // pred_check
            _
          $region54: #{embedding_lookup.1} parent=51 // pred_check_branch
            %245 = sbr.rel target = $region56
          $region55: #{embedding_lookup.1} parent=51 // pred_region
            %246 = sst [smem:[#allocation10]] [#allocation27]
            %247 = sst [smem:[#allocation11]] [#allocation26]
          $region56: #{embedding_lookup.1} parent=51 // pred_fallthru
            _
          %249 = shalt.err (0)
          %s251 = sshll.u32 %s242, 4
          %s252 = int_to_ptr.vmem [resolvable:$true] %s251
          %254 = dma.hbm_to_vmem [thread:$0]  %s240, 16, %s252, %s243
          %s255 = sadd.s32 %s233, 1
          %s256 = sld [smem:[#allocation5 + %s255]]
          %p257 = scmp.gt.s32.totalorder %s256, 0
          %s258 = scalar_select %p257, %s256, 0
          %p259 = scmp.lt.s32.totalorder %s258, 255
          %s260 = scalar_select %p259, %s258, 255
          %s261 = smul.addr %s260, 16
          %s262 = scalar_lea.hbm %s1, %s261
          %s263 = sadd.s32 1, %s241
          %s264 = scalar_lea.vmem [#allocation2], %s263
          %s265 = scalar_lea.sflag [#allocation3], %s263
          // Predicated region
          $region57: #{embedding_lookup.1} parent=51 // pred_check
            _
          $region58: #{embedding_lookup.1} parent=51 // pred_check_branch
            %267 = sbr.rel target = $region60
          $region59: #{embedding_lookup.1} parent=51 // pred_region
            %268 = sst [smem:[#allocation10]] [#allocation29]
            %269 = sst [smem:[#allocation11]] [#allocation28]
          $region60: #{embedding_lookup.1} parent=51 // pred_fallthru
            _
          %271 = shalt.err (0)
          %s273 = sshll.u32 %s264, 4
          %s274 = int_to_ptr.vmem [resolvable:$true] %s273
          %276 = dma.hbm_to_vmem [thread:$0]  %s262, 16, %s274, %s265
          %s277 = sadd.s32 %s233, 2
          %s278 = sld [smem:[#allocation5 + %s277]]
          %p279 = scmp.gt.s32.totalorder %s278, 0
          %s280 = scalar_select %p279, %s278, 0
          %p281 = scmp.lt.s32.totalorder %s280, 255
          %s282 = scalar_select %p281, %s280, 255
          %s283 = smul.addr %s282, 16
          %s284 = scalar_lea.hbm %s1, %s283
          %s285 = sadd.s32 2, %s241
          %s286 = scalar_lea.vmem [#allocation2], %s285
          %s287 = scalar_lea.sflag [#allocation3], %s285
          // Predicated region
          $region61: #{embedding_lookup.1} parent=51 // pred_check
            _
          $region62: #{embedding_lookup.1} parent=51 // pred_check_branch
            %289 = sbr.rel target = $region64
          $region63: #{embedding_lookup.1} parent=51 // pred_region
            %290 = sst [smem:[#allocation10]] [#allocation31]
            %291 = sst [smem:[#allocation11]] [#allocation30]
          $region64: #{embedding_lookup.1} parent=51 // pred_fallthru
            _
          %293 = shalt.err (0)
          %s295 = sshll.u32 %s286, 4
          %s296 = int_to_ptr.vmem [resolvable:$true] %s295
          %298 = dma.hbm_to_vmem [thread:$0]  %s284, 16, %s296, %s287
          %s299 = sadd.s32 %s233, 3
          %s300 = sld [smem:[#allocation5 + %s299]]
          %p301 = scmp.gt.s32.totalorder %s300, 0
          %s302 = scalar_select %p301, %s300, 0
          %p303 = scmp.lt.s32.totalorder %s302, 255
          %s304 = scalar_select %p303, %s302, 255
          %s305 = smul.addr %s304, 16
          %s306 = scalar_lea.hbm %s1, %s305
          %s307 = sadd.s32 3, %s241
          %s308 = scalar_lea.vmem [#allocation2], %s307
          %s309 = scalar_lea.sflag [#allocation3], %s307
          // Predicated region
          $region65: #{embedding_lookup.1} parent=51 // pred_check
            _
          $region66: #{embedding_lookup.1} parent=51 // pred_check_branch
            %311 = sbr.rel target = $region68
          $region67: #{embedding_lookup.1} parent=51 // pred_region
            %312 = sst [smem:[#allocation10]] [#allocation33]
            %313 = sst [smem:[#allocation11]] [#allocation32]
          $region68: #{embedding_lookup.1} parent=51 // pred_fallthru
            _
          %315 = shalt.err (0)
          %s317 = sshll.u32 %s308, 4
          %s318 = int_to_ptr.vmem [resolvable:$true] %s317
          %320 = dma.hbm_to_vmem [thread:$0]  %s306, 16, %s318, %s309
          %s321 = sadd.s32 %s233, 4
          %s322 = sld [smem:[#allocation5 + %s321]]
          %p323 = scmp.gt.s32.totalorder %s322, 0
          %s324 = scalar_select %p323, %s322, 0
          %p325 = scmp.lt.s32.totalorder %s324, 255
          %s326 = scalar_select %p325, %s324, 255
          %s327 = smul.addr %s326, 16
          %s328 = scalar_lea.hbm %s1, %s327
          %s329 = sadd.s32 4, %s241
          %s330 = scalar_lea.vmem [#allocation2], %s329
          %s331 = scalar_lea.sflag [#allocation3], %s329
          // Predicated region
          $region69: #{embedding_lookup.1} parent=51 // pred_check
            _
          $region70: #{embedding_lookup.1} parent=51 // pred_check_branch
            %333 = sbr.rel target = $region72
          $region71: #{embedding_lookup.1} parent=51 // pred_region
            %334 = sst [smem:[#allocation10]] [#allocation35]
            %335 = sst [smem:[#allocation11]] [#allocation34]
          $region72: #{embedding_lookup.1} parent=51 // pred_fallthru
            _
          %337 = shalt.err (0)
          %s339 = sshll.u32 %s330, 4
          %s340 = int_to_ptr.vmem [resolvable:$true] %s339
          %342 = dma.hbm_to_vmem [thread:$0]  %s328, 16, %s340, %s331
          %s343 = sadd.s32 %s233, 5
          %s344 = sld [smem:[#allocation5 + %s343]]
          %p345 = scmp.gt.s32.totalorder %s344, 0
          %s346 = scalar_select %p345, %s344, 0
          %p347 = scmp.lt.s32.totalorder %s346, 255
          %s348 = scalar_select %p347, %s346, 255
          %s349 = smul.addr %s348, 16
          %s350 = scalar_lea.hbm %s1, %s349
          %s351 = sadd.s32 5, %s241
          %s352 = scalar_lea.vmem [#allocation2], %s351
          %s353 = scalar_lea.sflag [#allocation3], %s351
          // Predicated region
          $region73: #{embedding_lookup.1} parent=51 // pred_check
            _
          $region74: #{embedding_lookup.1} parent=51 // pred_check_branch
            %355 = sbr.rel target = $region76
          $region75: #{embedding_lookup.1} parent=51 // pred_region
            %356 = sst [smem:[#allocation10]] [#allocation37]
            %357 = sst [smem:[#allocation11]] [#allocation36]
          $region76: #{embedding_lookup.1} parent=51 // pred_fallthru
            _
          %359 = shalt.err (0)
          %s361 = sshll.u32 %s352, 4
          %s362 = int_to_ptr.vmem [resolvable:$true] %s361
          %364 = dma.hbm_to_vmem [thread:$0]  %s350, 16, %s362, %s353
          %s365 = sadd.s32 %s233, 6
          %s366 = sld [smem:[#allocation5 + %s365]]
          %p367 = scmp.gt.s32.totalorder %s366, 0
          %s368 = scalar_select %p367, %s366, 0
          %p369 = scmp.lt.s32.totalorder %s368, 255
          %s370 = scalar_select %p369, %s368, 255
          %s371 = smul.addr %s370, 16
          %s372 = scalar_lea.hbm %s1, %s371
          %s373 = sadd.s32 6, %s241
          %s374 = scalar_lea.vmem [#allocation2], %s373
          %s375 = scalar_lea.sflag [#allocation3], %s373
          // Predicated region
          $region77: #{embedding_lookup.1} parent=51 // pred_check
            _
          $region78: #{embedding_lookup.1} parent=51 // pred_check_branch
            %377 = sbr.rel target = $region80
          $region79: #{embedding_lookup.1} parent=51 // pred_region
            %378 = sst [smem:[#allocation10]] [#allocation39]
            %379 = sst [smem:[#allocation11]] [#allocation38]
          $region80: #{embedding_lookup.1} parent=51 // pred_fallthru
            _
          %381 = shalt.err (0)
          %s383 = sshll.u32 %s374, 4
          %s384 = int_to_ptr.vmem [resolvable:$true] %s383
          %386 = dma.hbm_to_vmem [thread:$0]  %s372, 16, %s384, %s375
          %s387 = sadd.s32 %s233, 7
          %s388 = sld [smem:[#allocation5 + %s387]]
          %p389 = scmp.gt.s32.totalorder %s388, 0
          %s390 = scalar_select %p389, %s388, 0
          %p391 = scmp.lt.s32.totalorder %s390, 255
          %s392 = scalar_select %p391, %s390, 255
          %s393 = smul.addr %s392, 16
          %s394 = scalar_lea.hbm %s1, %s393
          %s395 = sadd.s32 7, %s241
          %s396 = scalar_lea.vmem [#allocation2], %s395
          %s397 = scalar_lea.sflag [#allocation3], %s395
          // Predicated region
          $region81: #{embedding_lookup.1} parent=51 // pred_check
            _
          $region82: #{embedding_lookup.1} parent=51 // pred_check_branch
            %399 = sbr.rel target = $region84
          $region83: #{embedding_lookup.1} parent=51 // pred_region
            %400 = sst [smem:[#allocation10]] [#allocation41]
            %401 = sst [smem:[#allocation11]] [#allocation40]
          $region84: #{embedding_lookup.1} parent=51 // pred_fallthru
            _
          %403 = shalt.err (0)
          %s405 = sshll.u32 %s396, 4
          %s406 = int_to_ptr.vmem [resolvable:$true] %s405
          %408 = dma.hbm_to_vmem [thread:$0]  %s394, 16, %s406, %s397
        $region52: #{embedding_lookup.1} parent=11 // pred_fallthru
          _
        %p409 = scmp.lt.s32.totalorder %s17, 0
        %s410 = ssub.s32 0, %s17
        %s411 = scalar_select %p409, %s410, %s17
        %s412 = sand.u32 %s411, 1
        %s413 = ssub.s32 0, %s412
        %s414 = scalar_select %p409, %s413, %s412
        %p415 = scmp.ne.s32.totalorder %s414, 0
        %p416 = scmp.lt.s32.totalorder %s414, 0
        %p417 = pnand %p416, %p415
        %p418 = pneg %p417
        %s419 = sadd.s32 %s414, 2
        %s420 = scalar_select %p418, %s419, %s414
        %s421 = smul.u32 %s420, 8
        %s422 = scalar_lea.sflag [#allocation3], %s421
        %s423 = smul.u32 1, 1
        %s424 = sshll.u32 %s423, 4
        %425 = dma.done %s422, %s424
        %s426 = sadd.s32 1, %s421
        %s427 = scalar_lea.sflag [#allocation3], %s426
        %s428 = sshll.u32 %s423, 4
        %429 = dma.done %s427, %s428
        %s430 = sadd.s32 2, %s421
        %s431 = scalar_lea.sflag [#allocation3], %s430
        %s432 = sshll.u32 %s423, 4
        %433 = dma.done %s431, %s432
        %s434 = sadd.s32 3, %s421
        %s435 = scalar_lea.sflag [#allocation3], %s434
        %s436 = sshll.u32 %s423, 4
        %437 = dma.done %s435, %s436
        %s438 = sadd.s32 4, %s421
        %s439 = scalar_lea.sflag [#allocation3], %s438
        %s440 = sshll.u32 %s423, 4
        %441 = dma.done %s439, %s440
        %s442 = sadd.s32 5, %s421
        %s443 = scalar_lea.sflag [#allocation3], %s442
        %s444 = sshll.u32 %s423, 4
        %445 = dma.done %s443, %s444
        %s446 = sadd.s32 6, %s421
        %s447 = scalar_lea.sflag [#allocation3], %s446
        %s448 = sshll.u32 %s423, 4
        %449 = dma.done %s447, %s448
        %s450 = sadd.s32 7, %s421
        %s451 = scalar_lea.sflag [#allocation3], %s450
        %s452 = sshll.u32 %s423, 4
        %453 = dma.done %s451, %s452
        %s454 = scalar_lea.vmem [#allocation2], %s421
        %v455 = vld [vmem:[%s454] sm:$0xff]
        %456 = vst [vmem:[%s53] sm:$0xff] %v455
        %s457 = sand.u32 %s26, 1
        %s458 = scalar_lea.sflag [#allocation7], %s457
        %s459 = sand.u32 %s26, 1
        %s460 = smul.addr %s459, 8
        %s461 = scalar_lea.vmem [#allocation6], %s460
        // Predicated region
        $region85: #{embedding_lookup.1} parent=11 // pred_check
          %p462 = pneg %p32
        $region86: #{embedding_lookup.1} parent=11 // pred_check_branch
          %464 = sbr.rel (%p462) target = $region88
        $region87: #{embedding_lookup.1} parent=11 // pred_region
          %s466 = ssub.s32 128, 128
          %467 = vsyncadd %s458, %s466
          %s468 = smul.addr %s17, 128
          %s469 = scalar_lea.hbm %s2, %s468
          %s471 = sshll.u32 %s461, 4
          %s472 = int_to_ptr.vmem [resolvable:$true] %s471
          %474 = dma.vmem_to_hbm [thread:$0]  %s472, 128, %s469, %s458
        $region88: #{embedding_lookup.1} parent=11 // pred_fallthru
          _
      $region12: #{embedding_lookup.1} parent=5 // pred_fallthru
        _
      %p475 = scmp.le.s32.totalorder 1, %s17
      // Predicated region
      $region89: #{embedding_lookup.1} parent=5 // pred_check
        %p476 = pneg %p475
      $region90: #{embedding_lookup.1} parent=5 // pred_check_branch
        %478 = sbr.rel (%p476) target = $region92
      $region91: #{embedding_lookup.1} parent=5 // pred_region
        %s479 = ssub.s32 %s17, 1
        // Predicated region
        $region93: #{embedding_lookup.1} parent=91 // pred_check
          %p480 = pneg %p38
        $region94: #{embedding_lookup.1} parent=91 // pred_check_branch
          %482 = sbr.rel (%p480) target = $region96
        $region95: #{embedding_lookup.1} parent=91 // pred_region
          %s483 = sand.u32 %s29, 1
          %s484 = scalar_lea.sflag [#allocation7], %s483
          %s485 = sand.u32 %s29, 1
          %s486 = smul.addr %s485, 8
          %s487 = scalar_lea.vmem [#allocation6], %s486
          %488 = dma.done %s484, 128
        $region96: #{embedding_lookup.1} parent=91 // pred_fallthru
          _
      $region92: #{embedding_lookup.1} parent=5 // pred_fallthru
        _
    $region6: #{embedding_lookup.1} parent=1 // loop_footer
      %s21 = sadd.s32 1, %s17
    $region7: #{embedding_lookup.1} parent=1 // loop_footer_branch
      %16 = sbr.rel target = $region3
    $region8: #{embedding_lookup.1} parent=1 // loop_exit
      _
    %489 = vsyncpa [#allocation7], 1
    %s490 = scalar_lea.sflag [#allocation7], 1
    %491 = vsyncpa %s490, 1
  %492 = vsyncmov [#allocation3]
  %s493 = vpop.sfrf %492
  %p494 = scmp.eq.s32.totalorder %s493, 0
  %p495 = pneg %p494
  %497 = shalt.err (%p495)
  %s498 = scalar_lea.sflag [#allocation3], 1
  %499 = vsyncmov %s498
  %s500 = vpop.sfrf %499
  %p501 = scmp.eq.s32.totalorder %s500, 0
  %p502 = pneg %p501
  %504 = shalt.err (%p502)
  %s505 = scalar_lea.sflag [#allocation3], 2
  %506 = vsyncmov %s505
  %s507 = vpop.sfrf %506
  %p508 = scmp.eq.s32.totalorder %s507, 0
  %p509 = pneg %p508
  %511 = shalt.err (%p509)
  %s512 = scalar_lea.sflag [#allocation3], 3
  %513 = vsyncmov %s512
  %s514 = vpop.sfrf %513
  %p515 = scmp.eq.s32.totalorder %s514, 0
  %p516 = pneg %p515
  %518 = shalt.err (%p516)
  %s519 = scalar_lea.sflag [#allocation3], 4
  %520 = vsyncmov %s519
  %s521 = vpop.sfrf %520
  %p522 = scmp.eq.s32.totalorder %s521, 0
  %p523 = pneg %p522
  %525 = shalt.err (%p523)
  %s526 = scalar_lea.sflag [#allocation3], 5
  %527 = vsyncmov %s526
  %s528 = vpop.sfrf %527
  %p529 = scmp.eq.s32.totalorder %s528, 0
  %p530 = pneg %p529
  %532 = shalt.err (%p530)
  %s533 = scalar_lea.sflag [#allocation3], 6
  %534 = vsyncmov %s533
  %s535 = vpop.sfrf %534
  %p536 = scmp.eq.s32.totalorder %s535, 0
  %p537 = pneg %p536
  %539 = shalt.err (%p537)
  %s540 = scalar_lea.sflag [#allocation3], 7
  %541 = vsyncmov %s540
  %s542 = vpop.sfrf %541
  %p543 = scmp.eq.s32.totalorder %s542, 0
  %p544 = pneg %p543
  %546 = shalt.err (%p544)
  %s547 = scalar_lea.sflag [#allocation3], 8
  %548 = vsyncmov %s547
  %s549 = vpop.sfrf %548
  %p550 = scmp.eq.s32.totalorder %s549, 0
  %p551 = pneg %p550
  %553 = shalt.err (%p551)
  %s554 = scalar_lea.sflag [#allocation3], 9
  %555 = vsyncmov %s554
  %s556 = vpop.sfrf %555
  %p557 = scmp.eq.s32.totalorder %s556, 0
  %p558 = pneg %p557
  %560 = shalt.err (%p558)
  %s561 = scalar_lea.sflag [#allocation3], 10
  %562 = vsyncmov %s561
  %s563 = vpop.sfrf %562
  %p564 = scmp.eq.s32.totalorder %s563, 0
  %p565 = pneg %p564
  %567 = shalt.err (%p565)
  %s568 = scalar_lea.sflag [#allocation3], 11
  %569 = vsyncmov %s568
  %s570 = vpop.sfrf %569
  %p571 = scmp.eq.s32.totalorder %s570, 0
  %p572 = pneg %p571
  %574 = shalt.err (%p572)
  %s575 = scalar_lea.sflag [#allocation3], 12
  %576 = vsyncmov %s575
  %s577 = vpop.sfrf %576
  %p578 = scmp.eq.s32.totalorder %s577, 0
  %p579 = pneg %p578
  %581 = shalt.err (%p579)
  %s582 = scalar_lea.sflag [#allocation3], 13
  %583 = vsyncmov %s582
  %s584 = vpop.sfrf %583
  %p585 = scmp.eq.s32.totalorder %s584, 0
  %p586 = pneg %p585
  %588 = shalt.err (%p586)
  %s589 = scalar_lea.sflag [#allocation3], 14
  %590 = vsyncmov %s589
  %s591 = vpop.sfrf %590
  %p592 = scmp.eq.s32.totalorder %s591, 0
  %p593 = pneg %p592
  %595 = shalt.err (%p593)
  %s596 = scalar_lea.sflag [#allocation3], 15
  %597 = vsyncmov %s596
  %s598 = vpop.sfrf %597
  %p599 = scmp.eq.s32.totalorder %s598, 0
  %p600 = pneg %p599
  %602 = shalt.err (%p600)

</llo_original>
